<compile_context>
chip_gen: v5e
topology: v5e:2x2
jax: 0.10.0
libtpu: 0.0.40
codegen_flags: <defaults>
</compile_context>

<pallas_src>
from functools import partial

import jax
import jax.numpy as jnp
from jax.experimental import pallas as pl
from jax.experimental.pallas import tpu as pltpu


def patch_embed_kernel(p_ref, w_ref, b_ref, o_ref):
    """One batch element: (N, K) @ (K, E) + (1, E) -> (N, E)."""
    proj = jnp.dot(p_ref[...], w_ref[...], preferred_element_type=jnp.float32)
    o_ref[...] = (proj + b_ref[...]).astype(o_ref.dtype)
    # TODO(synk): optional norm_layer (LayerNorm) support — default module uses Identity.


def patch_embed(x, conv_weight, conv_bias, patch_size):
    """Pallas PatchEmbed forward.

    x:           (B, C, H, W)
    conv_weight: (E, C, p, p)   (PyTorch Conv2d layout)
    conv_bias:   (E,)
    returns:     (B, N, E) with N = (H//p) * (W//p)
    """
    B, C, H, W = x.shape
    p = patch_size
    assert H % p == 0 and W % p == 0, "input size must be divisible by patch size"
    gh, gw = H // p, W // p
    N = gh * gw
    E = conv_weight.shape[0]
    K = C * p * p

    # im2patch: (B, C, gh, p, gw, p) -> (B, gh, gw, C, p, p) -> (B, N, K).
    # Inner flattening order (c, i, j) matches Conv2d's weight layout (E, C, p, p).
    patches = (
        x.reshape(B, C, gh, p, gw, p)
        .transpose(0, 2, 4, 1, 3, 5)
        .reshape(B, N, K)
    )
    w = conv_weight.reshape(E, K).T          # (K, E): y = patches @ w + b == Conv2d
    b = conv_bias.reshape(1, E)

    return pl.pallas_call(
        patch_embed_kernel,
        out_shape=jax.ShapeDtypeStruct((B, N, E), x.dtype),
        grid=(B,),
        in_specs=[
            # per-batch activation tile (batch dim squeezed out of the kernel view)
            pl.BlockSpec((None, N, K), lambda i: (i, 0, 0)),
            # projection weight / bias: constant block index -> resident across the grid
            pl.BlockSpec((K, E), lambda i: (0, 0)),
            pl.BlockSpec((1, E), lambda i: (0, 0)),
        ],
        out_specs=pl.BlockSpec((None, N, E), lambda i: (i, 0, 0)),
        compiler_params=pltpu.CompilerParams(
            dimension_semantics=("parallel",),
        ),
    )(patches, w, b)


def patch_embed_reference(x, conv_weight, conv_bias, patch_size):
    """Pure-JAX reference mirroring the PyTorch module (real convolution)."""
    B, C, H, W = x.shape
    p = patch_size
    E = conv_weight.shape[0]
    y = jax.lax.conv_general_dilated(
        x, conv_weight,
        window_strides=(p, p),
        padding="VALID",
        dimension_numbers=("NCHW", "OIHW", "NCHW"),
    ) + conv_bias.reshape(1, E, 1, 1)                       # (B, E, gh, gw)
    gh, gw = y.shape[2], y.shape[3]
    return y.reshape(B, E, gh * gw).transpose(0, 2, 1)      # (B, N, E)


if __name__ == "__main__":
    # Small shapes consistent with the module: img=16, patch=4, in_c=3, embed_dim=32.
    B, C, H, W = 2, 3, 16, 16
    patch_size = 4
    embed_dim = 32

    key = jax.random.PRNGKey(0)
    kx, kw, kb = jax.random.split(key, 3)
    f32 = jnp.float32

    x = jax.random.normal(kx, (B, C, H, W), f32)
    conv_weight = 0.02 * jax.random.normal(kw, (embed_dim, C, patch_size, patch_size), f32)
    conv_bias = 0.02 * jax.random.normal(kb, (embed_dim,), f32)

    out = patch_embed(x, conv_weight, conv_bias, patch_size)
    out = jax.block_until_ready(out)

    ref = patch_embed_reference(x, conv_weight, conv_bias, patch_size)

    N = (H // patch_size) * (W // patch_size)
    assert out.shape == (B, N, embed_dim), f"bad output shape {out.shape}"
    assert jnp.allclose(out, ref, rtol=1e-4, atol=1e-5), "Pallas output mismatch vs reference"

    print("KERNEL_OK")
</pallas_src>

<mosaic_0001>
module attributes {stable_mosaic.version = 11 : i64} {
  func.func @patch_embed_kernel(%arg0: i32, %arg1: memref<1x16x48xf32, #tpu.memory_space<vmem>>, %arg2: memref<48x32xf32, #tpu.memory_space<vmem>>, %arg3: memref<1x32xf32, #tpu.memory_space<vmem>>, %arg4: memref<1x16x32xf32, #tpu.memory_space<vmem>>) attributes {dimension_semantics = [#tpu.dimension_semantics<parallel>], iteration_bounds = array<i64: 2>, scalar_prefetch = 0 : i64, scratch_operands = 0 : i64, tpu.core_type = #tpu.core_type<tc>, window_params = [{transform_indices = @transform_0, window_bounds = array<i64: 1, 16, 48>}, {pipeline_mode = #tpu.pipeline_mode<synchronous>, transform_indices = @transform_1, window_bounds = array<i64: 48, 32>}, {pipeline_mode = #tpu.pipeline_mode<synchronous>, transform_indices = @transform_2, window_bounds = array<i64: 1, 32>}, {transform_indices = @transform_3, window_bounds = array<i64: 1, 16, 32>}]} {
    %c0 = arith.constant 0 : index
    %c0_0 = arith.constant 0 : index
    %c0_1 = arith.constant 0 : index
    %0 = vector.load %arg1[%c0, %c0_0, %c0_1] : memref<1x16x48xf32, #tpu.memory_space<vmem>>, vector<1x16x48xf32>
    %1 = vector.shape_cast %0 : vector<1x16x48xf32> to vector<16x48xf32>
    %c0_2 = arith.constant 0 : index
    %c0_3 = arith.constant 0 : index
    %2 = vector.load %arg2[%c0_2, %c0_3] : memref<48x32xf32, #tpu.memory_space<vmem>>, vector<48x32xf32>
    %cst = arith.constant dense<0.000000e+00> : vector<16x32xf32>
    %3 = tpu.matmul %1, %2, %cst {dimension_numbers = #tpu.dot_dimension_numbers<[1], [0], [0], [1], [0, 0, 1, 1], [], []>} : vector<16x48xf32>, vector<48x32xf32>, vector<16x32xf32> -> vector<16x32xf32>
    %c0_4 = arith.constant 0 : index
    %c0_5 = arith.constant 0 : index
    %4 = vector.load %arg3[%c0_4, %c0_5] : memref<1x32xf32, #tpu.memory_space<vmem>>, vector<1x32xf32>
    %5 = vector.broadcast %4 : vector<1x32xf32> to vector<16x32xf32>
    %6 = arith.addf %3, %5 : vector<16x32xf32>
    %c0_6 = arith.constant 0 : index
    %c0_7 = arith.constant 0 : index
    %c0_8 = arith.constant 0 : index
    %7 = vector.load %arg4[%c0_6, %c0_7, %c0_8] : memref<1x16x32xf32, #tpu.memory_space<vmem>>, vector<1x16x32xf32>
    %8 = vector.shape_cast %7 : vector<1x16x32xf32> to vector<16x32xf32>
    %9 = vector.shape_cast %6 : vector<16x32xf32> to vector<1x16x32xf32>
    tpu.vector_store %arg4[%c0_6, %c0_7, %c0_8], %9 {strides = array<i32>} : memref<1x16x32xf32, #tpu.memory_space<vmem>>, vector<1x16x32xf32>,
    return
  }
  func.func @transform_0(%arg0: i32) -> (i32, i32, i32) {
    %c0_i32 = arith.constant 0 : i32
    %c0_i32_0 = arith.constant 0 : i32
    %c0_i32_1 = arith.constant 0 : i32
    return %arg0, %c0_i32, %c0_i32_0 : i32, i32, i32
  }
  func.func @transform_1(%arg0: i32) -> (i32, i32) {
    %c0_i32 = arith.constant 0 : i32
    %c0_i32_0 = arith.constant 0 : i32
    %c0_i32_1 = arith.constant 0 : i32
    return %c0_i32, %c0_i32_0 : i32, i32
  }
  func.func @transform_2(%arg0: i32) -> (i32, i32) {
    %c0_i32 = arith.constant 0 : i32
    %c0_i32_0 = arith.constant 0 : i32
    %c0_i32_1 = arith.constant 0 : i32
    return %c0_i32, %c0_i32_0 : i32, i32
  }
  func.func @transform_3(%arg0: i32) -> (i32, i32, i32) {
    %c0_i32 = arith.constant 0 : i32
    %c0_i32_0 = arith.constant 0 : i32
    %c0_i32_1 = arith.constant 0 : i32
    return %arg0, %c0_i32, %c0_i32_0 : i32, i32, i32
  }
}

</mosaic_0001>

<llo_original>
// kernel: tpu_custom_call.1
$region0: #{tpu_custom_call.1}
  #allocation0 [shape = 'u32[]', space=smem, size = 0x4, offset = 0x4, fixed_abs, tag = 'smem constant byte address 0x4 - core index']
  #allocation1 [shape = 'u32[72,128]{1,0:T(1,128)}', space=vmem, size = 0x9000, scoped, tag = 'internal scratch']
  %s0 = inlined_call_operand.vmem [shape: f32[2,16,48], index: 0, kind: input, shape index: {}]
  %s1 = inlined_call_operand.vmem [shape: f32[48,32], index: 1, kind: input, shape index: {}]
  %s2 = inlined_call_operand.vmem [shape: f32[1,32], index: 2, kind: input, shape index: {}]
  %s3 = inlined_call_operand.hbm [shape: f32[2,16,32], index: 3, kind: output, shape index: {}]
  %s4 = sld [smem:[#allocation0]]
  $region45: #{tpu_custom_call.1} parent=0
    _
  %s6 = ssub.s32 1, %s4
  %s7 = scalar_select 0, %s6, %s4
  $region1: #{tpu_custom_call.1} parent=0
    #allocation2 [shape = 'u8[16384]{0}', space=vmem, size = 0x4000, scoped, tag = 'output window, operand 0']
    #allocation3 [shape = 's32[2]{0}', space=sflag, size = 0x8, scoped, tag = 'scoped memory for tpu_custom_call.1']
    %8 = vsyncpa [#allocation3], 0
    %s9 = scalar_lea.sflag [#allocation3], 1
    %10 = vsyncpa %s9, 0
    loop: start=0, step=1, limit=4
    $region2: #{tpu_custom_call.1} parent=1 // loop_pre_header
      _
    $region3: #{tpu_custom_call.1} parent=1 // loop_header
      %s12 = sphi 0, %s16
      %p13 = scmp.ge.s32.totalorder %s12, 4
      %s22 = sphi 0, %s24
      %s25 = sphi 0, %s22
      %s26 = sphi 0, %s25
      %s42 = sphi 0, %s26
      %s46 = sphi 0, %s46
      %s48 = sphi 0, %s46
      %s49 = sphi 0, %s48
      %s63 = sphi 0, %s49
      %s67 = sphi 0, %s67
      %s69 = sphi 0, %s67
      %s70 = sphi 0, %s69
      %s84 = sphi 0, %s70
      %s90 = sphi 0, %s92
      %s93 = sphi 0, %s90
      %s94 = sphi 0, %s93
      %s110 = sphi 0, %s94
    $region4: #{tpu_custom_call.1} parent=1 // loop_header_branch
      %15 = sbr.rel (%p13) target = $region8
    $region5: #{tpu_custom_call.1} parent=1 // loop_body
      %s17 = ssub.s32 %s12, 1
      %s18 = ssub.s32 %s12, 2
      %s19 = sadd.s32 %s12, 1
      %s20 = ssub.s32 %s12, %s19
      %p21 = scmp.eq.s32.totalorder %s20, 0
      %s23 = sadd.s32 %s22, 1
      %s24 = scalar_select %p21, %s22, %s23
      %p27 = pneg %p21
      %p28 = scmp.eq.s32.totalorder %s12, 1
      %p29 = por %p27, %p28
      %p30 = scmp.ne.s32.totalorder %s22, %s25
      %p31 = scmp.eq.s32.totalorder %s12, 0
      %p32 = por %p30, %p31
      %p33 = scmp.ne.s32.totalorder %s22, %s25
      %p34 = scmp.eq.s32.totalorder %s17, 1
      %p35 = por %p33, %p34
      %p36 = scmp.ne.s32.totalorder %s25, %s26
      %p37 = scmp.eq.s32.totalorder %s17, 0
      %p38 = por %p36, %p37
      %p39 = scmp.ne.s32.totalorder %s25, %s26
      %p40 = scmp.eq.s32.totalorder %s18, 1
      %p41 = por %p39, %p40
      %p43 = scmp.ne.s32.totalorder %s26, %s42
      %p44 = scmp.eq.s32.totalorder %s18, 0
      %p45 = por %p43, %p44
      %s47 = sadd.s32 %s46, 1
      %p50 = scmp.eq.s32.totalorder %s12, 1
      %p51 = scmp.ne.s32.totalorder %s46, %s48
      %p52 = scmp.eq.s32.totalorder %s12, 0
      %p53 = por %p51, %p52
      %p54 = scmp.ne.s32.totalorder %s46, %s48
      %p55 = scmp.eq.s32.totalorder %s17, 1
      %p56 = por %p54, %p55
      %p57 = scmp.ne.s32.totalorder %s48, %s49
      %p58 = scmp.eq.s32.totalorder %s17, 0
      %p59 = por %p57, %p58
      %p60 = scmp.ne.s32.totalorder %s48, %s49
      %p61 = scmp.eq.s32.totalorder %s18, 1
      %p62 = por %p60, %p61
      %p64 = scmp.ne.s32.totalorder %s49, %s63
      %p65 = scmp.eq.s32.totalorder %s18, 0
      %p66 = por %p64, %p65
      %s68 = sadd.s32 %s67, 1
      %p71 = scmp.eq.s32.totalorder %s12, 1
      %p72 = scmp.ne.s32.totalorder %s67, %s69
      %p73 = scmp.eq.s32.totalorder %s12, 0
      %p74 = por %p72, %p73
      %p75 = scmp.ne.s32.totalorder %s67, %s69
      %p76 = scmp.eq.s32.totalorder %s17, 1
      %p77 = por %p75, %p76
      %p78 = scmp.ne.s32.totalorder %s69, %s70
      %p79 = scmp.eq.s32.totalorder %s17, 0
      %p80 = por %p78, %p79
      %p81 = scmp.ne.s32.totalorder %s69, %s70
      %p82 = scmp.eq.s32.totalorder %s18, 1
      %p83 = por %p81, %p82
      %p85 = scmp.ne.s32.totalorder %s70, %s84
      %p86 = scmp.eq.s32.totalorder %s18, 0
      %p87 = por %p85, %p86
      %s88 = ssub.s32 %s12, %s19
      %p89 = scmp.eq.s32.totalorder %s88, 0
      %s91 = sadd.s32 %s90, 1
      %s92 = scalar_select %p89, %s90, %s91
      %p95 = pneg %p89
      %p96 = scmp.eq.s32.totalorder %s12, 1
      %p97 = por %p95, %p96
      %p98 = scmp.ne.s32.totalorder %s90, %s93
      %p99 = scmp.eq.s32.totalorder %s12, 0
      %p100 = por %p98, %p99
      %p101 = scmp.ne.s32.totalorder %s90, %s93
      %p102 = scmp.eq.s32.totalorder %s17, 1
      %p103 = por %p101, %p102
      %p104 = scmp.ne.s32.totalorder %s93, %s94
      %p105 = scmp.eq.s32.totalorder %s17, 0
      %p106 = por %p104, %p105
      %p107 = scmp.ne.s32.totalorder %s93, %s94
      %p108 = scmp.eq.s32.totalorder %s18, 1
      %p109 = por %p107, %p108
      %p111 = scmp.ne.s32.totalorder %s94, %s110
      %p112 = scmp.eq.s32.totalorder %s18, 0
      %p113 = por %p111, %p112
      %p114 = scmp.le.s32.totalorder 1, %s12
      %p115 = scmp.lt.s32.totalorder %s12, 3
      %p116 = pnand %p114, %p115
      %p117 = pneg %p116
      // Predicated region
      $region9: #{tpu_custom_call.1} parent=5 // pred_check
        _
      $region10: #{tpu_custom_call.1} parent=5 // pred_check_branch
        %119 = sbr.rel (%p116) target = $region12
      $region11: #{tpu_custom_call.1} parent=5 // pred_region
        %s120 = ssub.s32 %s12, 1
        // Predicated region
        $region13: #{tpu_custom_call.1} parent=11 // pred_check
          %p121 = pneg %p59
        $region14: #{tpu_custom_call.1} parent=11 // pred_check_branch
          %123 = sbr.rel (%p121) target = $region16
        $region15: #{tpu_custom_call.1} parent=11 // pred_region
          _
        $region16: #{tpu_custom_call.1} parent=11 // pred_fallthru
          _
        // Predicated region
        $region17: #{tpu_custom_call.1} parent=11 // pred_check
          %p124 = pneg %p80
        $region18: #{tpu_custom_call.1} parent=11 // pred_check_branch
          %126 = sbr.rel (%p124) target = $region20
        $region19: #{tpu_custom_call.1} parent=11 // pred_region
          _
        $region20: #{tpu_custom_call.1} parent=11 // pred_fallthru
          _
      $region12: #{tpu_custom_call.1} parent=5 // pred_fallthru
        _
      %p127 = scmp.lt.s32.totalorder %s12, 2
      // Predicated region
      $region21: #{tpu_custom_call.1} parent=5 // pred_check
        %p128 = pneg %p127
      $region22: #{tpu_custom_call.1} parent=5 // pred_check_branch
        %130 = sbr.rel (%p128) target = $region24
      $region23: #{tpu_custom_call.1} parent=5 // pred_region
        // Predicated region
        $region25: #{tpu_custom_call.1} parent=23 // pred_check
          %p131 = pneg %p32
        $region26: #{tpu_custom_call.1} parent=23 // pred_check_branch
          %133 = sbr.rel (%p131) target = $region28
        $region27: #{tpu_custom_call.1} parent=23 // pred_region
          %p134 = scmp.lt.s32.totalorder %s12, 1
          %s135 = scalar_select %p134, %s12, 1
          %s136 = smul.addr %s135, 2
          %s137 = smul.addr %s136, 8
          %s138 = scalar_lea.vmem %s0, %s137
        $region28: #{tpu_custom_call.1} parent=23 // pred_fallthru
          _
      $region24: #{tpu_custom_call.1} parent=5 // pred_fallthru
        _
      %p139 = scmp.le.s32.totalorder 1, %s12
      %p140 = scmp.lt.s32.totalorder %s12, 3
      %p141 = pnand %p139, %p140
      %p142 = pneg %p141
      // Predicated region
      $region29: #{tpu_custom_call.1} parent=5 // pred_check
        _
      $region30: #{tpu_custom_call.1} parent=5 // pred_check_branch
        %144 = sbr.rel (%p141) target = $region32
      $region31: #{tpu_custom_call.1} parent=5 // pred_region
        %s145 = ssub.s32 %s12, 1
        %p146 = scmp.lt.s32.totalorder %s17, 1
        %s147 = scalar_select %p146, %s17, 1
        %s148 = smul.addr %s147, 2
        %s149 = smul.addr %s148, 8
        %s150 = scalar_lea.vmem %s0, %s149
        %p151 = pneg %p38
        %p152 = pneg %p35
        %p153 = pneg %p59
        %p154 = pneg %p56
        %p155 = pneg %p80
        %p156 = pneg %p77
        %p157 = pneg %p106
        %p158 = pneg %p103
        %s159 = sand.u32 %s93, 1
        %s160 = scalar_lea.sflag [#allocation3], %s159
        %s161 = sand.u32 %s93, 1
        %s162 = smul.addr %s161, 16
        %s163 = scalar_lea.vmem [#allocation2], %s162
        %p164 = scmp.lt.s32.totalorder %s17, 1
        %s165 = scalar_select %p164, %s17, 1
        %s166 = smul.addr %s165, 2
        %s167 = smul.addr %s166, 8
        %s168 = scalar_lea.vmem %s0, %s167
        %v169 = vld [vmem:[%s168] sm:$0xff]
        %v170 = vld [vmem:[%s168 + $0x8] sm:$0xff]
        %v171 = vld [vmem:[%s1] sm:$0xff]
        %v172 = vld [vmem:[%s1 + $0x8] sm:$0xff]
        %v173 = vld [vmem:[%s1 + $0x10] sm:$0xff]
        %v174 = vld [vmem:[%s1 + $0x18] sm:$0xff]
        %v175 = vld [vmem:[%s1 + $0x20] sm:$0xff]
        %v176 = vld [vmem:[%s1 + $0x28] sm:$0xff]
        %v177 = vld [vmem:[%s2] sm:$0x1]
        %v179 = vperm.slane %v177, 0
        %vm181 = vcmask 392192
        %v183 = vsel %vm181, %v169, 0
        %v186 = vsel %vm181, %v170, 0
        %188 = vmatpush.msra.mxu0 0.0
        %189 = vmatpush.msra.mxu0 0.0
        %190 = vmatpush.msra.mxu0 0.0
        %191 = vmatpush.msra.mxu0 0.0
        %192 = vmatpush.msra.mxu0 0.0
        %193 = vmatpush.msra.mxu0 0.0
        %194 = vmatpush.msra.mxu0 0.0
        %195 = vmatpush.msra.mxu0 0.0
        %196 = vmatpush.msra.mxu0 0.0
        %197 = vmatpush.msra.mxu0 0.0
        %198 = vmatpush.msra.mxu0 %v176
        %199 = vmatpush.msra.mxu0 %v175
        %200 = vmatpush.msra.mxu0 %v174
        %201 = vmatpush.msra.mxu0 %v173
        %202 = vmatpush.msra.mxu0 %v172
        %203 = vmatpush.msra.mxu0 %v171
        %204 = vmatmul.f32.gmra.mxu0 %v183
        %v205 = vpop.f32.mrf.mxu0
        %v206 = vadd.f32 %v179, %v205
        %207 = vmatmul.f32.gmra.mxu0 %v186
        %v208 = vpop.f32.mrf.mxu0
        %v209 = vadd.f32 %v179, %v208
        %210 = vdwg.mxu0
        %vm211 = vcmask 261120
        %212 = vst.msk [vmem:[%s163] sm:$0xff] %vm211, %v206
        %213 = vst.msk [vmem:[%s163 + $0x8] sm:$0xff] %vm211, %v209
        %s214 = sand.u32 %s93, 1
        %s215 = scalar_lea.sflag [#allocation3], %s214
        %s216 = sand.u32 %s93, 1
        %s217 = smul.addr %s216, 16
        %s218 = scalar_lea.vmem [#allocation2], %s217
        // Predicated region
        $region33: #{tpu_custom_call.1} parent=31 // pred_check
          %p219 = pneg %p103
        $region34: #{tpu_custom_call.1} parent=31 // pred_check_branch
          %221 = sbr.rel (%p219) target = $region36
        $region35: #{tpu_custom_call.1} parent=31 // pred_region
          %223 = vsyncadd %s215, 0
          %s224 = smul.addr %s17, 2
          %s225 = smul.addr %s224, 8
          %s226 = scalar_lea.hbm %s3, %s225
          %s227 = sshll.u32 %s218, 4
          %s228 = int_to_ptr.vmem [resolvable:$true] %s227
          %s229 = sshll.u32 %s226, 4
          %s230 = int_to_ptr.hbm [resolvable:$true] %s229
          %235 = dma.vmem_to_hbm [thread:$0]  %s228, 256, %s230, %s215, 128, 128, 8
        $region36: #{tpu_custom_call.1} parent=31 // pred_fallthru
          _
      $region32: #{tpu_custom_call.1} parent=5 // pred_fallthru
        _
      %p236 = scmp.le.s32.totalorder 2, %s12
      // Predicated region
      $region37: #{tpu_custom_call.1} parent=5 // pred_check
        %p237 = pneg %p236
      $region38: #{tpu_custom_call.1} parent=5 // pred_check_branch
        %239 = sbr.rel (%p237) target = $region40
      $region39: #{tpu_custom_call.1} parent=5 // pred_region
        %s240 = ssub.s32 %s12, 2
        // Predicated region
        $region41: #{tpu_custom_call.1} parent=39 // pred_check
          %p241 = pneg %p109
        $region42: #{tpu_custom_call.1} parent=39 // pred_check_branch
          %243 = sbr.rel (%p241) target = $region44
        $region43: #{tpu_custom_call.1} parent=39 // pred_region
          %s244 = sand.u32 %s94, 1
          %s245 = scalar_lea.sflag [#allocation3], %s244
          %s246 = sand.u32 %s94, 1
          %s247 = smul.addr %s246, 16
          %s248 = scalar_lea.vmem [#allocation2], %s247
          %250 = dma.done %s245, 256
        $region44: #{tpu_custom_call.1} parent=39 // pred_fallthru
          _
      $region40: #{tpu_custom_call.1} parent=5 // pred_fallthru
        _
    $region6: #{tpu_custom_call.1} parent=1 // loop_footer
      %s16 = sadd.s32 1, %s12
    $region7: #{tpu_custom_call.1} parent=1 // loop_footer_branch
      %11 = sbr.rel target = $region3
    $region8: #{tpu_custom_call.1} parent=1 // loop_exit
      _
    %251 = vsyncpa [#allocation3], 1
    %s252 = scalar_lea.sflag [#allocation3], 1
    %253 = vsyncpa %s252, 1

</llo_original>
